<compile_context>
chip_gen: v7x
topology: tpu7x:2x2x1
jax: 0.10.0
libtpu: 0.0.40
codegen_flags: <defaults>
</compile_context>

<pallas_src>
import numpy as np
import jax
import jax.numpy as jnp
from jax.experimental import pallas as pl
from jax.experimental.pallas import tpu as pltpu

NUM_CLASSES = (32, 16, 8, 4, 2)       # [0] = finest (level 5) ... [4] = coarsest (level 1)
HEAD_SIZES = (2, 4, 8, 16, 32)        # classifier_1 .. classifier_5 output widths
HEAD_OFFSETS = (0, 2, 6, 14, 30, 62)  # column offsets of each head inside the slab
TOTAL_CLASSES = 62
PAD_CLASSES = 64                      # 62 classes padded to a lane-friendly 64
FEATURE_SIZE = 64
IN_CHANNELS = 4
EPS = 1e-12


def _round_up(x, m):
    return (x + m - 1) // m * m


def _build_seg_matrix():
    # S[i, j] = 1 iff columns i and j belong to the same head (pad columns 62..63 form
    # their own segment so their denominator stays finite; they are sliced off later).
    seg = np.zeros(PAD_CLASSES, np.int32)
    for h in range(5):
        seg[HEAD_OFFSETS[h]:HEAD_OFFSETS[h + 1]] = h
    seg[TOTAL_CLASSES:] = 5
    return (seg[:, None] == seg[None, :]).astype(np.float32)


_SEG_NP = _build_seg_matrix()


# ----------------------------- fused Pallas kernel -----------------------------

def _fused_kernel(x_ref, weff_ref, bf_ref, wnT_ref, b_ref, seg_ref, out_ref):
    # ---- backbone stand-in: avg-pool folded into one K=C*HW MXU matmul + ReLU ---
    # TODO(synk): the real WideResNet backbone (`model` / self.features_2) is a
    # constructor argument not defined in the reference source; deterministic
    # stand-in (global avg pool + linear + ReLU) used instead.
    x = x_ref[...]                                            # (TB, C*HW)
    feats = jnp.dot(x, weff_ref[...],
                    preferred_element_type=jnp.float32) + bf_ref[...]
    feats = jnp.maximum(feats, 0.0)                           # (TB, F) f32

    # ---- ONE fused matmul against all 5 (pre-normalized, pre-transposed) heads --
    # logits == x @ W_norm.T + b in the reference.
    logits = jnp.dot(feats, wnT_ref[...],
                     preferred_element_type=jnp.float32) + b_ref[...]   # (TB, 64)

    # ---- segmented softmax: 5 heads inside one 64-wide slab ---------------------
    # per-head maxes (numerical safety; 5 small XLU reductions)
    col = jax.lax.broadcasted_iota(jnp.int32, (1, PAD_CLASSES), 1)
    m_full = jnp.zeros_like(logits)
    for h in range(5):
        lo, hi = HEAD_OFFSETS[h], HEAD_OFFSETS[h + 1]
        mask = jnp.logical_and(col >= lo, col < hi)           # (1, 64)
        m_h = jnp.max(jnp.where(mask, logits, -jnp.inf), axis=1, keepdims=True)
        m_full = m_full + jnp.where(mask, m_h, 0.0)
    e = jnp.exp(logits - m_full)
    # all 5 denominators in ONE block-diagonal segment-sum matmul (MXU, not XLU).
    denom = jnp.dot(e, seg_ref[...], preferred_element_type=jnp.float32)
    sm = e * pl.reciprocal(denom, approx=False)               # exact; negligible cost

    # ---- single unmasked lane-dense (TB, 128) output store: [logits | softmax] --
    out_ref[...] = jnp.concatenate([logits, sm], axis=1)


def _run_fused(x_flat, w_eff, bf, wnT, b_all, seg_mat):
    B, K = x_flat.shape
    # Batch tile: at most 1024 rows (~4 MiB input tile, ~9 MiB total with double
    # buffering — under every generation's default scoped VMEM), and at least two
    # grid tiles whenever B > 8 so v7x's two TensorCores both get work on the
    # "parallel" batch axis.
    TB = min(1024, _round_up(max(1, (B + 1) // 2), 8))
    B_pad = _round_up(B, TB)
    if B_pad != B:
        x_flat = jnp.pad(x_flat, ((0, B_pad - B), (0, 0)))
    grid = (B_pad // TB,)
    slab = pl.pallas_call(
        _fused_kernel,
        out_shape=jax.ShapeDtypeStruct((B_pad, 2 * PAD_CLASSES), jnp.float32),
        grid=grid,
        in_specs=[
            pl.BlockSpec((TB, K), lambda i: (i, 0)),
            # weights / biases / segment matrix: constant block index keeps them
            # VMEM-resident across batch tiles (no re-DMA per tile).
            pl.BlockSpec((K, FEATURE_SIZE), lambda i: (0, 0)),
            pl.BlockSpec((1, FEATURE_SIZE), lambda i: (0, 0)),
            pl.BlockSpec((FEATURE_SIZE, PAD_CLASSES), lambda i: (0, 0)),
            pl.BlockSpec((1, PAD_CLASSES), lambda i: (0, 0)),
            pl.BlockSpec((PAD_CLASSES, PAD_CLASSES), lambda i: (0, 0)),
        ],
        out_specs=pl.BlockSpec((TB, 2 * PAD_CLASSES), lambda i: (i, 0)),
        compiler_params=pltpu.CompilerParams(
            dimension_semantics=("parallel",)),
    )(x_flat, w_eff, bf, wnT, b_all, seg_mat)
    return slab[:B]


# ----------------------------- plain-JAX loss glue -----------------------------

def _l2norm(w):
    n = jnp.sqrt(jnp.sum(w * w, axis=1, keepdims=True))
    return w / jnp.maximum(n, EPS)


def _weight_consistency(wn_coarse, wn_fine):
    # cosine_sim(normalized coarse rows, normalized sum of child rows); both operands
    # are unit (or zero) rows, so the cosine reduces to the dot product (matches
    # nn.CosineSimilarity(eps=1e-8) behavior).
    child = wn_fine.reshape(wn_coarse.shape[0], 2, wn_fine.shape[1]).sum(axis=1)
    child_hat = _l2norm(child)
    return jnp.mean(jnp.sum(wn_coarse * child_hat, axis=1))


def _jsd(p, q, eps=1e-12):
    # TODO(synk): JSDSimilarLoss source unavailable; standard Jensen-Shannon divergence used.
    m = 0.5 * (p + q)
    kl = lambda a, b: jnp.sum(a * (jnp.log(a + eps) - jnp.log(b + eps)), axis=1)
    return jnp.mean(0.5 * kl(p, m) + 0.5 * kl(q, m))


def _top1_acc(logits, t):
    return jnp.mean((jnp.argmax(logits, axis=1) == t).astype(jnp.float32)) * 100.0


@jax.jit
def forward(x_img, targets, params):
    B, C, H, W = x_img.shape
    HW = H * W
    x_flat = x_img.reshape(B, C * HW)

    # Fold the global average pool into the first matmul: W_eff[c*HW + p, :] = wf[c, :]/HW.
    # (If the upstream producer supplies bf16 activations, the kernel keeps f32
    # accumulation via preferred_element_type; cast W_eff to match x.)
    w_eff = (jnp.repeat(params["wf"], HW, axis=0) / HW).astype(x_flat.dtype)

    # Concatenate the 5 classifier weights/biases into one padded slab and
    # L2-normalize the rows ONCE (shared by the kernel matmul and the
    # weight-consistency loss; the reference's second F.normalize is a no-op).
    w_all = jnp.concatenate(
        [params["w1"], params["w2"], params["w3"], params["w4"], params["w5"],
         jnp.zeros((PAD_CLASSES - TOTAL_CLASSES, FEATURE_SIZE), jnp.float32)], axis=0)
    wn_all = _l2norm(w_all)                                   # (64, 64)
    wnT = wn_all.T                                            # pre-transposed for the kernel
    b_all = jnp.concatenate(
        [params["b1"], params["b2"], params["b3"], params["b4"], params["b5"],
         jnp.zeros((1, PAD_CLASSES - TOTAL_CLASSES), jnp.float32)], axis=1)

    slab = _run_fused(x_flat, w_eff, params["bf"], wnT, b_all,
                      jnp.asarray(_SEG_NP))
    lg_all = slab[:, 0:PAD_CLASSES]
    sm_all = slab[:, PAD_CLASSES:2 * PAD_CLASSES]

    def head_cols(a, h):
        lo, hi = HEAD_OFFSETS[h], HEAD_OFFSETS[h + 1]
        return a[:, lo:hi]

    lg1, lg2, lg3, lg4, lg5 = [head_cols(lg_all, h) for h in range(5)]
    sm1, sm2, sm3, sm4, sm5 = [head_cols(sm_all, h) for h in range(5)]

    # Hierarchical coarsening (p_hat): trivial strided adds on the host (one third
    # less kernel output traffic than emitting the pair columns from the kernel).
    def pair_sum(a):
        return a[:, 0::2] + a[:, 1::2]

    p_hat_l5 = pair_sum(sm5)   # (B, 16) vs sm4
    p_hat_l4 = pair_sum(sm4)   # (B, 8)  vs sm3
    p_hat_l3 = pair_sum(sm3)   # (B, 4)  vs sm2
    p_hat_l2 = pair_sum(sm2)   # (B, 2)  vs sm1

    # TODO(synk): get_targets()/map_lX_to_lY are not defined in the reference source;
    # a synthetic contiguous 2-way hierarchy (parent i -> children [2i, 2i+1]) is used.
    l4_t = targets // 2
    l3_t = targets // 4
    l2_t = targets // 8
    l1_t = targets // 16

    # CrossEntropyLoss on level-5 logits (pre-softmax, as in the reference).
    logp5 = jax.nn.log_softmax(lg5, axis=1)
    ce_loss = -jnp.mean(jnp.take_along_axis(logp5, targets[:, None], axis=1))

    acc = jnp.stack([_top1_acc(lg1, l1_t), _top1_acc(lg2, l2_t),
                     _top1_acc(lg3, l3_t), _top1_acc(lg4, l4_t),
                     _top1_acc(lg5, targets)])

    def head_rows(h):
        lo, hi = HEAD_OFFSETS[h], HEAD_OFFSETS[h + 1]
        return wn_all[lo:hi, :]

    wn1, wn2, wn3, wn4, wn5 = [head_rows(h) for h in range(5)]
    l2_weight_loss = (_weight_consistency(wn1, wn2) + _weight_consistency(wn2, wn3)
                      + _weight_consistency(wn3, wn4) + _weight_consistency(wn4, wn5))

    jsd_loss = (_jsd(p_hat_l5, sm4) + _jsd(p_hat_l4, sm3)
                + _jsd(p_hat_l3, sm2) + _jsd(p_hat_l2, sm1))

    # TODO(synk): create_dissimilar_pairs / JSDDissimilarLoss are undefined in the
    # reference source; dissimilarity loss contributes 0 here.
    dissim_loss = jnp.float32(0.0)

    loss = ce_loss + jsd_loss - l2_weight_loss + dissim_loss
    aux = {"loss": loss, "ce_loss": ce_loss, "jsd_loss": jsd_loss,
           "l2_weight_loss": l2_weight_loss, "dissim_loss": dissim_loss,
           "acc": acc}
    return sm5, aux   # module returns softmax-ed l5_out


# ----------------------------- parameter init -----------------------------

def init_params(key):
    ks = jax.random.split(key, 12)

    def linear(kw, kb, fan_in, fan_out):
        bound = 1.0 / (fan_in ** 0.5)
        w = jax.random.uniform(kw, (fan_out, fan_in), jnp.float32, -bound, bound)
        b = jax.random.uniform(kb, (1, fan_out), jnp.float32, -bound, bound)
        return w, b

    params = {}
    params["wf"] = jax.random.uniform(ks[0], (IN_CHANNELS, FEATURE_SIZE),
                                      jnp.float32, -0.5, 0.5)
    params["bf"] = jax.random.uniform(ks[1], (1, FEATURE_SIZE),
                                      jnp.float32, -0.5, 0.5)
    for i, c in enumerate(HEAD_SIZES, start=1):
        w, b = linear(ks[2 * i], ks[2 * i + 1], FEATURE_SIZE, c)
        params[f"w{i}"] = w
        params[f"b{i}"] = b
    return params


if __name__ == "__main__":
    key = jax.random.PRNGKey(0)
    kx, kt, kp = jax.random.split(key, 3)
    x = jax.random.normal(kx, (2, IN_CHANNELS, 16, 16), jnp.float32)   # NCHW like PyTorch
    targets = jax.random.randint(kt, (2,), 0, NUM_CLASSES[0], jnp.int32)
    params = init_params(kp)

    l5_out, aux = forward(x, targets, params)
    jax.block_until_ready((l5_out, aux))
    assert l5_out.shape == (2, NUM_CLASSES[0])
    assert bool(jnp.isfinite(aux["loss"]))
    print("KERNEL_OK")
</pallas_src>

<mosaic_0001>
module attributes {stable_mosaic.version = 11 : i64} {
  func.func @_fused_kernel(%arg0: i32, %arg1: memref<8x1024xf32, #tpu.memory_space<vmem>>, %arg2: memref<1024x64xf32, #tpu.memory_space<vmem>>, %arg3: memref<1x64xf32, #tpu.memory_space<vmem>>, %arg4: memref<64x64xf32, #tpu.memory_space<vmem>>, %arg5: memref<1x64xf32, #tpu.memory_space<vmem>>, %arg6: memref<64x64xf32, #tpu.memory_space<vmem>>, %arg7: memref<8x128xf32, #tpu.memory_space<vmem>>) attributes {dimension_semantics = [#tpu.dimension_semantics<parallel>], iteration_bounds = array<i64: 1>, scalar_prefetch = 0 : i64, scratch_operands = 0 : i64, tpu.core_type = #tpu.core_type<tc>, window_params = [{transform_indices = @transform_0, window_bounds = array<i64: 8, 1024>}, {pipeline_mode = #tpu.pipeline_mode<synchronous>, transform_indices = @transform_1, window_bounds = array<i64: 1024, 64>}, {pipeline_mode = #tpu.pipeline_mode<synchronous>, transform_indices = @transform_2, window_bounds = array<i64: 1, 64>}, {pipeline_mode = #tpu.pipeline_mode<synchronous>, transform_indices = @transform_3, window_bounds = array<i64: 64, 64>}, {pipeline_mode = #tpu.pipeline_mode<synchronous>, transform_indices = @transform_4, window_bounds = array<i64: 1, 64>}, {pipeline_mode = #tpu.pipeline_mode<synchronous>, transform_indices = @transform_5, window_bounds = array<i64: 64, 64>}, {transform_indices = @transform_6, window_bounds = array<i64: 8, 128>}]} {
    %c0 = arith.constant 0 : index
    %c0_0 = arith.constant 0 : index
    %0 = vector.load %arg1[%c0, %c0_0] : memref<8x1024xf32, #tpu.memory_space<vmem>>, vector<8x1024xf32>
    %c0_1 = arith.constant 0 : index
    %c0_2 = arith.constant 0 : index
    %1 = vector.load %arg2[%c0_1, %c0_2] : memref<1024x64xf32, #tpu.memory_space<vmem>>, vector<1024x64xf32>
    %cst = arith.constant dense<0.000000e+00> : vector<8x64xf32>
    %2 = tpu.matmul %0, %1, %cst {dimension_numbers = #tpu.dot_dimension_numbers<[1], [0], [0], [1], [0, 0, 1, 1], [], []>} : vector<8x1024xf32>, vector<1024x64xf32>, vector<8x64xf32> -> vector<8x64xf32>
    %c0_3 = arith.constant 0 : index
    %c0_4 = arith.constant 0 : index
    %3 = vector.load %arg3[%c0_3, %c0_4] : memref<1x64xf32, #tpu.memory_space<vmem>>, vector<1x64xf32>
    %4 = vector.broadcast %3 : vector<1x64xf32> to vector<8x64xf32>
    %5 = arith.addf %2, %4 : vector<8x64xf32>
    %cst_5 = arith.constant 0.000000e+00 : f32
    %6 = vector.broadcast %cst_5 : f32 to vector<8x64xf32>
    %7 = arith.maximumf %5, %6 : vector<8x64xf32>
    %c0_6 = arith.constant 0 : index
    %c0_7 = arith.constant 0 : index
    %8 = vector.load %arg4[%c0_6, %c0_7] : memref<64x64xf32, #tpu.memory_space<vmem>>, vector<64x64xf32>
    %cst_8 = arith.constant dense<0.000000e+00> : vector<8x64xf32>
    %9 = tpu.matmul %7, %8, %cst_8 {dimension_numbers = #tpu.dot_dimension_numbers<[1], [0], [0], [1], [0, 0, 1, 1], [], []>} : vector<8x64xf32>, vector<64x64xf32>, vector<8x64xf32> -> vector<8x64xf32>
    %c0_9 = arith.constant 0 : index
    %c0_10 = arith.constant 0 : index
    %10 = vector.load %arg5[%c0_9, %c0_10] : memref<1x64xf32, #tpu.memory_space<vmem>>, vector<1x64xf32>
    %11 = vector.broadcast %10 : vector<1x64xf32> to vector<8x64xf32>
    %12 = arith.addf %9, %11 : vector<8x64xf32>
    %13 = tpu.iota {dimensions = array<i32: 1>} : vector<1x64xi32>
    %cst_11 = arith.constant 0.000000e+00 : f32
    %14 = vector.broadcast %cst_11 : f32 to vector<8x64xf32>
    %c0_i32 = arith.constant 0 : i32
    %15 = vector.broadcast %c0_i32 : i32 to vector<1x64xi32>
    %16 = arith.cmpi sge, %13, %15 : vector<1x64xi32>
    %c2_i32 = arith.constant 2 : i32
    %17 = vector.broadcast %c2_i32 : i32 to vector<1x64xi32>
    %18 = arith.cmpi slt, %13, %17 : vector<1x64xi32>
    %19 = arith.andi %16, %18 : vector<1x64xi1>
    %cst_12 = arith.constant 0xFF800000 : f32
    %20 = vector.shape_cast %19 : vector<1x64xi1> to vector<1x64xi1>
    %21 = vector.broadcast %20 : vector<1x64xi1> to vector<8x64xi1>
    %22 = vector.broadcast %cst_12 : f32 to vector<8x64xf32>
    %23 = arith.select %21, %12, %22 : vector<8x64xi1>, vector<8x64xf32>
    %cst_13 = arith.constant dense<0xFF800000> : vector<8xf32>
    %24 = vector.multi_reduction <maximumf>, %23, %cst_13 [1] : vector<8x64xf32> to vector<8xf32>
    %25 = vector.shape_cast %24 : vector<8xf32> to vector<8x1xf32>
    %cst_14 = arith.constant 0.000000e+00 : f32
    %26 = vector.shape_cast %19 : vector<1x64xi1> to vector<1x64xi1>
    %27 = vector.broadcast %26 : vector<1x64xi1> to vector<8x64xi1>
    %28 = vector.shape_cast %25 : vector<8x1xf32> to vector<8x1xf32>
    %29 = vector.broadcast %28 : vector<8x1xf32> to vector<8x64xf32>
    %30 = vector.broadcast %cst_14 : f32 to vector<8x64xf32>
    %31 = arith.select %27, %29, %30 : vector<8x64xi1>, vector<8x64xf32>
    %32 = arith.addf %14, %31 : vector<8x64xf32>
    %c2_i32_15 = arith.constant 2 : i32
    %33 = vector.broadcast %c2_i32_15 : i32 to vector<1x64xi32>
    %34 = arith.cmpi sge, %13, %33 : vector<1x64xi32>
    %c6_i32 = arith.constant 6 : i32
    %35 = vector.broadcast %c6_i32 : i32 to vector<1x64xi32>
    %36 = arith.cmpi slt, %13, %35 : vector<1x64xi32>
    %37 = arith.andi %34, %36 : vector<1x64xi1>
    %cst_16 = arith.constant 0xFF800000 : f32
    %38 = vector.shape_cast %37 : vector<1x64xi1> to vector<1x64xi1>
    %39 = vector.broadcast %38 : vector<1x64xi1> to vector<8x64xi1>
    %40 = vector.broadcast %cst_16 : f32 to vector<8x64xf32>
    %41 = arith.select %39, %12, %40 : vector<8x64xi1>, vector<8x64xf32>
    %cst_17 = arith.constant dense<0xFF800000> : vector<8xf32>
    %42 = vector.multi_reduction <maximumf>, %41, %cst_17 [1] : vector<8x64xf32> to vector<8xf32>
    %43 = vector.shape_cast %42 : vector<8xf32> to vector<8x1xf32>
    %cst_18 = arith.constant 0.000000e+00 : f32
    %44 = vector.shape_cast %37 : vector<1x64xi1> to vector<1x64xi1>
    %45 = vector.broadcast %44 : vector<1x64xi1> to vector<8x64xi1>
    %46 = vector.shape_cast %43 : vector<8x1xf32> to vector<8x1xf32>
    %47 = vector.broadcast %46 : vector<8x1xf32> to vector<8x64xf32>
    %48 = vector.broadcast %cst_18 : f32 to vector<8x64xf32>
    %49 = arith.select %45, %47, %48 : vector<8x64xi1>, vector<8x64xf32>
    %50 = arith.addf %32, %49 : vector<8x64xf32>
    %c6_i32_19 = arith.constant 6 : i32
    %51 = vector.broadcast %c6_i32_19 : i32 to vector<1x64xi32>
    %52 = arith.cmpi sge, %13, %51 : vector<1x64xi32>
    %c14_i32 = arith.constant 14 : i32
    %53 = vector.broadcast %c14_i32 : i32 to vector<1x64xi32>
    %54 = arith.cmpi slt, %13, %53 : vector<1x64xi32>
    %55 = arith.andi %52, %54 : vector<1x64xi1>
    %cst_20 = arith.constant 0xFF800000 : f32
    %56 = vector.shape_cast %55 : vector<1x64xi1> to vector<1x64xi1>
    %57 = vector.broadcast %56 : vector<1x64xi1> to vector<8x64xi1>
    %58 = vector.broadcast %cst_20 : f32 to vector<8x64xf32>
    %59 = arith.select %57, %12, %58 : vector<8x64xi1>, vector<8x64xf32>
    %cst_21 = arith.constant dense<0xFF800000> : vector<8xf32>
    %60 = vector.multi_reduction <maximumf>, %59, %cst_21 [1] : vector<8x64xf32> to vector<8xf32>
    %61 = vector.shape_cast %60 : vector<8xf32> to vector<8x1xf32>
    %cst_22 = arith.constant 0.000000e+00 : f32
    %62 = vector.shape_cast %55 : vector<1x64xi1> to vector<1x64xi1>
    %63 = vector.broadcast %62 : vector<1x64xi1> to vector<8x64xi1>
    %64 = vector.shape_cast %61 : vector<8x1xf32> to vector<8x1xf32>
    %65 = vector.broadcast %64 : vector<8x1xf32> to vector<8x64xf32>
    %66 = vector.broadcast %cst_22 : f32 to vector<8x64xf32>
    %67 = arith.select %63, %65, %66 : vector<8x64xi1>, vector<8x64xf32>
    %68 = arith.addf %50, %67 : vector<8x64xf32>
    %c14_i32_23 = arith.constant 14 : i32
    %69 = vector.broadcast %c14_i32_23 : i32 to vector<1x64xi32>
    %70 = arith.cmpi sge, %13, %69 : vector<1x64xi32>
    %c30_i32 = arith.constant 30 : i32
    %71 = vector.broadcast %c30_i32 : i32 to vector<1x64xi32>
    %72 = arith.cmpi slt, %13, %71 : vector<1x64xi32>
    %73 = arith.andi %70, %72 : vector<1x64xi1>
    %cst_24 = arith.constant 0xFF800000 : f32
    %74 = vector.shape_cast %73 : vector<1x64xi1> to vector<1x64xi1>
    %75 = vector.broadcast %74 : vector<1x64xi1> to vector<8x64xi1>
    %76 = vector.broadcast %cst_24 : f32 to vector<8x64xf32>
    %77 = arith.select %75, %12, %76 : vector<8x64xi1>, vector<8x64xf32>
    %cst_25 = arith.constant dense<0xFF800000> : vector<8xf32>
    %78 = vector.multi_reduction <maximumf>, %77, %cst_25 [1] : vector<8x64xf32> to vector<8xf32>
    %79 = vector.shape_cast %78 : vector<8xf32> to vector<8x1xf32>
    %cst_26 = arith.constant 0.000000e+00 : f32
    %80 = vector.shape_cast %73 : vector<1x64xi1> to vector<1x64xi1>
    %81 = vector.broadcast %80 : vector<1x64xi1> to vector<8x64xi1>
    %82 = vector.shape_cast %79 : vector<8x1xf32> to vector<8x1xf32>
    %83 = vector.broadcast %82 : vector<8x1xf32> to vector<8x64xf32>
    %84 = vector.broadcast %cst_26 : f32 to vector<8x64xf32>
    %85 = arith.select %81, %83, %84 : vector<8x64xi1>, vector<8x64xf32>
    %86 = arith.addf %68, %85 : vector<8x64xf32>
    %c30_i32_27 = arith.constant 30 : i32
    %87 = vector.broadcast %c30_i32_27 : i32 to vector<1x64xi32>
    %88 = arith.cmpi sge, %13, %87 : vector<1x64xi32>
    %c62_i32 = arith.constant 62 : i32
    %89 = vector.broadcast %c62_i32 : i32 to vector<1x64xi32>
    %90 = arith.cmpi slt, %13, %89 : vector<1x64xi32>
    %91 = arith.andi %88, %90 : vector<1x64xi1>
    %cst_28 = arith.constant 0xFF800000 : f32
    %92 = vector.shape_cast %91 : vector<1x64xi1> to vector<1x64xi1>
    %93 = vector.broadcast %92 : vector<1x64xi1> to vector<8x64xi1>
    %94 = vector.broadcast %cst_28 : f32 to vector<8x64xf32>
    %95 = arith.select %93, %12, %94 : vector<8x64xi1>, vector<8x64xf32>
    %cst_29 = arith.constant dense<0xFF800000> : vector<8xf32>
    %96 = vector.multi_reduction <maximumf>, %95, %cst_29 [1] : vector<8x64xf32> to vector<8xf32>
    %97 = vector.shape_cast %96 : vector<8xf32> to vector<8x1xf32>
    %cst_30 = arith.constant 0.000000e+00 : f32
    %98 = vector.shape_cast %91 : vector<1x64xi1> to vector<1x64xi1>
    %99 = vector.broadcast %98 : vector<1x64xi1> to vector<8x64xi1>
    %100 = vector.shape_cast %97 : vector<8x1xf32> to vector<8x1xf32>
    %101 = vector.broadcast %100 : vector<8x1xf32> to vector<8x64xf32>
    %102 = vector.broadcast %cst_30 : f32 to vector<8x64xf32>
    %103 = arith.select %99, %101, %102 : vector<8x64xi1>, vector<8x64xf32>
    %104 = arith.addf %86, %103 : vector<8x64xf32>
    %105 = arith.subf %12, %104 : vector<8x64xf32>
    %106 = math.exp %105 : vector<8x64xf32>
    %c0_31 = arith.constant 0 : index
    %c0_32 = arith.constant 0 : index
    %107 = vector.load %arg6[%c0_31, %c0_32] : memref<64x64xf32, #tpu.memory_space<vmem>>, vector<64x64xf32>
    %cst_33 = arith.constant dense<0.000000e+00> : vector<8x64xf32>
    %108 = tpu.matmul %106, %107, %cst_33 {dimension_numbers = #tpu.dot_dimension_numbers<[1], [0], [0], [1], [0, 0, 1, 1], [], []>} : vector<8x64xf32>, vector<64x64xf32>, vector<8x64xf32> -> vector<8x64xf32>
    %109 = tpu.reciprocal %108 : vector<8x64xf32> -> vector<8x64xf32>
    %110 = arith.mulf %106, %109 : vector<8x64xf32>
    %111 = tpu.concatenate %12, %110 in 1 : vector<8x64xf32>, vector<8x64xf32> -> vector<8x128xf32>
    %c0_34 = arith.constant 0 : index
    %c0_35 = arith.constant 0 : index
    %112 = vector.load %arg7[%c0_34, %c0_35] : memref<8x128xf32, #tpu.memory_space<vmem>>, vector<8x128xf32>
    tpu.vector_store %arg7[%c0_34, %c0_35], %111 {strides = array<i32>} : memref<8x128xf32, #tpu.memory_space<vmem>>, vector<8x128xf32>,
    return
  }
  func.func @transform_0(%arg0: i32) -> (i32, i32) {
    %c0_i32 = arith.constant 0 : i32
    %c0_i32_0 = arith.constant 0 : i32
    return %arg0, %c0_i32 : i32, i32
  }
  func.func @transform_1(%arg0: i32) -> (i32, i32) {
    %c0_i32 = arith.constant 0 : i32
    %c0_i32_0 = arith.constant 0 : i32
    %c0_i32_1 = arith.constant 0 : i32
    return %c0_i32, %c0_i32_0 : i32, i32
  }
  func.func @transform_2(%arg0: i32) -> (i32, i32) {
    %c0_i32 = arith.constant 0 : i32
    %c0_i32_0 = arith.constant 0 : i32
    %c0_i32_1 = arith.constant 0 : i32
    return %c0_i32, %c0_i32_0 : i32, i32
  }
  func.func @transform_3(%arg0: i32) -> (i32, i32) {
    %c0_i32 = arith.constant 0 : i32
    %c0_i32_0 = arith.constant 0 : i32
    %c0_i32_1 = arith.constant 0 : i32
    return %c0_i32, %c0_i32_0 : i32, i32
  }
  func.func @transform_4(%arg0: i32) -> (i32, i32) {
    %c0_i32 = arith.constant 0 : i32
    %c0_i32_0 = arith.constant 0 : i32
    %c0_i32_1 = arith.constant 0 : i32
    return %c0_i32, %c0_i32_0 : i32, i32
  }
  func.func @transform_5(%arg0: i32) -> (i32, i32) {
    %c0_i32 = arith.constant 0 : i32
    %c0_i32_0 = arith.constant 0 : i32
    %c0_i32_1 = arith.constant 0 : i32
    return %c0_i32, %c0_i32_0 : i32, i32
  }
  func.func @transform_6(%arg0: i32) -> (i32, i32) {
    %c0_i32 = arith.constant 0 : i32
    %c0_i32_0 = arith.constant 0 : i32
    return %arg0, %c0_i32 : i32, i32
  }
}

</mosaic_0001>

<llo_original>
// kernel: forward.1
$region0: #{forward.1}
  #allocation0 [shape = 'u32[]', space=smem, size = 0x4, offset = 0x4, fixed_abs, tag = 'smem constant byte address 0x4 - core index']
  #allocation1 [shape = 'u32[144,128]{1,0:T(1,128)}', space=vmem, size = 0x12000, scoped, tag = 'internal scratch']
  %s0 = inlined_call_operand.vmem [shape: f32[8,1024], index: 0, kind: input, shape index: {}]
  %s1 = inlined_call_operand.vmem [shape: f32[1024,64], index: 1, kind: input, shape index: {}]
  %s2 = inlined_call_operand.vmem [shape: f32[1,64], index: 2, kind: input, shape index: {}]
  %s3 = inlined_call_operand.vmem [shape: f32[64,64], index: 3, kind: input, shape index: {}]
  %s4 = inlined_call_operand.vmem [shape: f32[1,64], index: 4, kind: input, shape index: {}]
  %s5 = inlined_call_operand.vmem [shape: f32[64,64], index: 5, kind: input, shape index: {}]
  %s6 = inlined_call_operand.vmem [shape: f32[8,128], index: 6, kind: output, shape index: {}]
  %s7 = sld [smem:[#allocation0]]
  $region34: #{forward.1} parent=0
    _
  %s9 = ssub.s32 1, %s7
  %s10 = scalar_select 0, %s9, %s7
  // Predicated region
  $region2: #{forward.1} parent=0 // pred_check
    _
  $region3: #{forward.1} parent=0 // pred_check_branch
    %12 = sbr.rel (0) target = $region5
  $region4: #{forward.1} parent=0 // pred_region
    _
  $region5: #{forward.1} parent=0 // pred_fallthru
    _
  // Predicated region
  $region6: #{forward.1} parent=0 // pred_check
    _
  $region7: #{forward.1} parent=0 // pred_check_branch
    %14 = sbr.rel (0) target = $region9
  $region8: #{forward.1} parent=0 // pred_region
    _
  $region9: #{forward.1} parent=0 // pred_fallthru
    _
  // Predicated region
  $region10: #{forward.1} parent=0 // pred_check
    _
  $region11: #{forward.1} parent=0 // pred_check_branch
    %16 = sbr.rel (0) target = $region13
  $region12: #{forward.1} parent=0 // pred_region
    _
  $region13: #{forward.1} parent=0 // pred_fallthru
    _
  // Predicated region
  $region14: #{forward.1} parent=0 // pred_check
    _
  $region15: #{forward.1} parent=0 // pred_check_branch
    %18 = sbr.rel (0) target = $region17
  $region16: #{forward.1} parent=0 // pred_region
    _
  $region17: #{forward.1} parent=0 // pred_fallthru
    _
  // Predicated region
  $region18: #{forward.1} parent=0 // pred_check
    _
  $region19: #{forward.1} parent=0 // pred_check_branch
    %20 = sbr.rel (0) target = $region21
  $region20: #{forward.1} parent=0 // pred_region
    _
  $region21: #{forward.1} parent=0 // pred_fallthru
    _
  // Predicated region
  $region22: #{forward.1} parent=0 // pred_check
    _
  $region23: #{forward.1} parent=0 // pred_check_branch
    %22 = sbr.rel (0) target = $region25
  $region24: #{forward.1} parent=0 // pred_region
    _
  $region25: #{forward.1} parent=0 // pred_fallthru
    _
  %v23 = vld [vmem:[%s0] sm:$0xff]
  %v24 = vld [vmem:[%s0 + $0x8] sm:$0xff]
  %v25 = vld [vmem:[%s0 + $0x10] sm:$0xff]
  %v26 = vld [vmem:[%s0 + $0x18] sm:$0xff]
  %v27 = vld [vmem:[%s0 + $0x20] sm:$0xff]
  %v28 = vld [vmem:[%s0 + $0x28] sm:$0xff]
  %v29 = vld [vmem:[%s0 + $0x30] sm:$0xff]
  %v30 = vld [vmem:[%s0 + $0x38] sm:$0xff]
  %v31 = vld [vmem:[%s1] sm:$0xff]
  %v32 = vld [vmem:[%s1 + $0x8] sm:$0xff]
  %v33 = vld [vmem:[%s1 + $0x10] sm:$0xff]
  %v34 = vld [vmem:[%s1 + $0x18] sm:$0xff]
  %v35 = vld [vmem:[%s1 + $0x20] sm:$0xff]
  %v36 = vld [vmem:[%s1 + $0x28] sm:$0xff]
  %v37 = vld [vmem:[%s1 + $0x30] sm:$0xff]
  %v38 = vld [vmem:[%s1 + $0x38] sm:$0xff]
  %v39 = vld [vmem:[%s1 + $0x40] sm:$0xff]
  %v40 = vld [vmem:[%s1 + $0x48] sm:$0xff]
  %v41 = vld [vmem:[%s1 + $0x50] sm:$0xff]
  %v42 = vld [vmem:[%s1 + $0x58] sm:$0xff]
  %v43 = vld [vmem:[%s1 + $0x60] sm:$0xff]
  %v44 = vld [vmem:[%s1 + $0x68] sm:$0xff]
  %v45 = vld [vmem:[%s1 + $0x70] sm:$0xff]
  %v46 = vld [vmem:[%s1 + $0x78] sm:$0xff]
  %v47 = vld [vmem:[%s1 + $0x80] sm:$0xff]
  %v48 = vld [vmem:[%s1 + $0x88] sm:$0xff]
  %v49 = vld [vmem:[%s1 + $0x90] sm:$0xff]
  %v50 = vld [vmem:[%s1 + $0x98] sm:$0xff]
  %v51 = vld [vmem:[%s1 + $0xa0] sm:$0xff]
  %v52 = vld [vmem:[%s1 + $0xa8] sm:$0xff]
  %v53 = vld [vmem:[%s1 + $0xb0] sm:$0xff]
  %v54 = vld [vmem:[%s1 + $0xb8] sm:$0xff]
  %v55 = vld [vmem:[%s1 + $0xc0] sm:$0xff]
  %v56 = vld [vmem:[%s1 + $0xc8] sm:$0xff]
  %v57 = vld [vmem:[%s1 + $0xd0] sm:$0xff]
  %v58 = vld [vmem:[%s1 + $0xd8] sm:$0xff]
  %v59 = vld [vmem:[%s1 + $0xe0] sm:$0xff]
  %v60 = vld [vmem:[%s1 + $0xe8] sm:$0xff]
  %v61 = vld [vmem:[%s1 + $0xf0] sm:$0xff]
  %v62 = vld [vmem:[%s1 + $0xf8] sm:$0xff]
  %v63 = vld [vmem:[%s1 + $0x100] sm:$0xff]
  %v64 = vld [vmem:[%s1 + $0x108] sm:$0xff]
  %v65 = vld [vmem:[%s1 + $0x110] sm:$0xff]
  %v66 = vld [vmem:[%s1 + $0x118] sm:$0xff]
  %v67 = vld [vmem:[%s1 + $0x120] sm:$0xff]
  %v68 = vld [vmem:[%s1 + $0x128] sm:$0xff]
  %v69 = vld [vmem:[%s1 + $0x130] sm:$0xff]
  %v70 = vld [vmem:[%s1 + $0x138] sm:$0xff]
  %v71 = vld [vmem:[%s1 + $0x140] sm:$0xff]
  %v72 = vld [vmem:[%s1 + $0x148] sm:$0xff]
  %v73 = vld [vmem:[%s1 + $0x150] sm:$0xff]
  %v74 = vld [vmem:[%s1 + $0x158] sm:$0xff]
  %v75 = vld [vmem:[%s1 + $0x160] sm:$0xff]
  %v76 = vld [vmem:[%s1 + $0x168] sm:$0xff]
  %v77 = vld [vmem:[%s1 + $0x170] sm:$0xff]
  %v78 = vld [vmem:[%s1 + $0x178] sm:$0xff]
  %v79 = vld [vmem:[%s1 + $0x180] sm:$0xff]
  %v80 = vld [vmem:[%s1 + $0x188] sm:$0xff]
  %v81 = vld [vmem:[%s1 + $0x190] sm:$0xff]
  %v82 = vld [vmem:[%s1 + $0x198] sm:$0xff]
  %v83 = vld [vmem:[%s1 + $0x1a0] sm:$0xff]
  %v84 = vld [vmem:[%s1 + $0x1a8] sm:$0xff]
  %v85 = vld [vmem:[%s1 + $0x1b0] sm:$0xff]
  %v86 = vld [vmem:[%s1 + $0x1b8] sm:$0xff]
  %v87 = vld [vmem:[%s1 + $0x1c0] sm:$0xff]
  %v88 = vld [vmem:[%s1 + $0x1c8] sm:$0xff]
  %v89 = vld [vmem:[%s1 + $0x1d0] sm:$0xff]
  %v90 = vld [vmem:[%s1 + $0x1d8] sm:$0xff]
  %v91 = vld [vmem:[%s1 + $0x1e0] sm:$0xff]
  %v92 = vld [vmem:[%s1 + $0x1e8] sm:$0xff]
  %v93 = vld [vmem:[%s1 + $0x1f0] sm:$0xff]
  %v94 = vld [vmem:[%s1 + $0x1f8] sm:$0xff]
  %v95 = vld [vmem:[%s1 + $0x200] sm:$0xff]
  %v96 = vld [vmem:[%s1 + $0x208] sm:$0xff]
  %v97 = vld [vmem:[%s1 + $0x210] sm:$0xff]
  %v98 = vld [vmem:[%s1 + $0x218] sm:$0xff]
  %v99 = vld [vmem:[%s1 + $0x220] sm:$0xff]
  %v100 = vld [vmem:[%s1 + $0x228] sm:$0xff]
  %v101 = vld [vmem:[%s1 + $0x230] sm:$0xff]
  %v102 = vld [vmem:[%s1 + $0x238] sm:$0xff]
  %v103 = vld [vmem:[%s1 + $0x240] sm:$0xff]
  %v104 = vld [vmem:[%s1 + $0x248] sm:$0xff]
  %v105 = vld [vmem:[%s1 + $0x250] sm:$0xff]
  %v106 = vld [vmem:[%s1 + $0x258] sm:$0xff]
  %v107 = vld [vmem:[%s1 + $0x260] sm:$0xff]
  %v108 = vld [vmem:[%s1 + $0x268] sm:$0xff]
  %v109 = vld [vmem:[%s1 + $0x270] sm:$0xff]
  %v110 = vld [vmem:[%s1 + $0x278] sm:$0xff]
  %v111 = vld [vmem:[%s1 + $0x280] sm:$0xff]
  %v112 = vld [vmem:[%s1 + $0x288] sm:$0xff]
  %v113 = vld [vmem:[%s1 + $0x290] sm:$0xff]
  %v114 = vld [vmem:[%s1 + $0x298] sm:$0xff]
  %v115 = vld [vmem:[%s1 + $0x2a0] sm:$0xff]
  %v116 = vld [vmem:[%s1 + $0x2a8] sm:$0xff]
  %v117 = vld [vmem:[%s1 + $0x2b0] sm:$0xff]
  %v118 = vld [vmem:[%s1 + $0x2b8] sm:$0xff]
  %v119 = vld [vmem:[%s1 + $0x2c0] sm:$0xff]
  %v120 = vld [vmem:[%s1 + $0x2c8] sm:$0xff]
  %v121 = vld [vmem:[%s1 + $0x2d0] sm:$0xff]
  %v122 = vld [vmem:[%s1 + $0x2d8] sm:$0xff]
  %v123 = vld [vmem:[%s1 + $0x2e0] sm:$0xff]
  %v124 = vld [vmem:[%s1 + $0x2e8] sm:$0xff]
  %v125 = vld [vmem:[%s1 + $0x2f0] sm:$0xff]
  %v126 = vld [vmem:[%s1 + $0x2f8] sm:$0xff]
  %v127 = vld [vmem:[%s1 + $0x300] sm:$0xff]
  %v128 = vld [vmem:[%s1 + $0x308] sm:$0xff]
  %v129 = vld [vmem:[%s1 + $0x310] sm:$0xff]
  %v130 = vld [vmem:[%s1 + $0x318] sm:$0xff]
  %v131 = vld [vmem:[%s1 + $0x320] sm:$0xff]
  %v132 = vld [vmem:[%s1 + $0x328] sm:$0xff]
  %v133 = vld [vmem:[%s1 + $0x330] sm:$0xff]
  %v134 = vld [vmem:[%s1 + $0x338] sm:$0xff]
  %v135 = vld [vmem:[%s1 + $0x340] sm:$0xff]
  %v136 = vld [vmem:[%s1 + $0x348] sm:$0xff]
  %v137 = vld [vmem:[%s1 + $0x350] sm:$0xff]
  %v138 = vld [vmem:[%s1 + $0x358] sm:$0xff]
  %v139 = vld [vmem:[%s1 + $0x360] sm:$0xff]
  %v140 = vld [vmem:[%s1 + $0x368] sm:$0xff]
  %v141 = vld [vmem:[%s1 + $0x370] sm:$0xff]
  %v142 = vld [vmem:[%s1 + $0x378] sm:$0xff]
  %v143 = vld [vmem:[%s1 + $0x380] sm:$0xff]
  %v144 = vld [vmem:[%s1 + $0x388] sm:$0xff]
  %v145 = vld [vmem:[%s1 + $0x390] sm:$0xff]
  %v146 = vld [vmem:[%s1 + $0x398] sm:$0xff]
  %v147 = vld [vmem:[%s1 + $0x3a0] sm:$0xff]
  %v148 = vld [vmem:[%s1 + $0x3a8] sm:$0xff]
  %v149 = vld [vmem:[%s1 + $0x3b0] sm:$0xff]
  %v150 = vld [vmem:[%s1 + $0x3b8] sm:$0xff]
  %v151 = vld [vmem:[%s1 + $0x3c0] sm:$0xff]
  %v152 = vld [vmem:[%s1 + $0x3c8] sm:$0xff]
  %v153 = vld [vmem:[%s1 + $0x3d0] sm:$0xff]
  %v154 = vld [vmem:[%s1 + $0x3d8] sm:$0xff]
  %v155 = vld [vmem:[%s1 + $0x3e0] sm:$0xff]
  %v156 = vld [vmem:[%s1 + $0x3e8] sm:$0xff]
  %v157 = vld [vmem:[%s1 + $0x3f0] sm:$0xff]
  %v158 = vld [vmem:[%s1 + $0x3f8] sm:$0xff]
  %v159 = vld [vmem:[%s2] sm:$0x1]
  %v161 = vlaneseq
  %v162 = vshrl.u32 %v161, 7
  %v163 = vsub.s32 0, %v162
  %v164 = vrot.slane %v159, %v163
  %166 = vmatprep.subr.mxu0 0.0
  %167 = vmatpush1.msra.mxu0 %v31
  %168 = vmatprep.subr.mxu0 0.0
  %169 = vmatpush1.msra.mxu0 %v32
  %170 = vmatprep.subr.mxu0 0.0
  %171 = vmatpush1.msra.mxu0 %v33
  %172 = vmatprep.subr.mxu0 0.0
  %173 = vmatpush1.msra.mxu0 %v34
  %174 = vmatprep.subr.mxu0 0.0
  %175 = vmatpush1.msra.mxu0 %v35
  %176 = vmatprep.subr.mxu0 0.0
  %177 = vmatpush1.msra.mxu0 %v36
  %178 = vmatprep.subr.mxu0 0.0
  %179 = vmatpush1.msra.mxu0 %v37
  %180 = vmatprep.subr.mxu0 0.0
  %181 = vmatpush1.msra.mxu0 %v38
  %182 = vmatprep.subr.mxu0 0.0
  %183 = vmatpush1.msra.mxu0 %v39
  %184 = vmatprep.subr.mxu0 0.0
  %185 = vmatpush1.msra.mxu0 %v40
  %186 = vmatprep.subr.mxu0 0.0
  %187 = vmatpush1.msra.mxu0 %v41
  %188 = vmatprep.subr.mxu0 0.0
  %189 = vmatpush1.msra.mxu0 %v42
  %190 = vmatprep.subr.mxu0 0.0
  %191 = vmatpush1.msra.mxu0 %v43
  %192 = vmatprep.subr.mxu0 0.0
  %193 = vmatpush1.msra.mxu0 %v44
  %194 = vmatprep.subr.mxu0 0.0
  %195 = vmatpush1.msra.mxu0 %v45
  %196 = vmatprep.subr.mxu0 0.0
  %197 = vmatpush1.msra.mxu0 %v46
  %198 = vmatprep.subr.mxu0 0.0
  %199 = vmatpush1.msra.mxu0 %v47
  %200 = vmatprep.subr.mxu0 0.0
  %201 = vmatpush1.msra.mxu0 %v48
  %202 = vmatprep.subr.mxu0 0.0
  %203 = vmatpush1.msra.mxu0 %v49
  %204 = vmatprep.subr.mxu0 0.0
  %205 = vmatpush1.msra.mxu0 %v50
  %206 = vmatprep.subr.mxu0 0.0
  %207 = vmatpush1.msra.mxu0 %v51
  %208 = vmatprep.subr.mxu0 0.0
  %209 = vmatpush1.msra.mxu0 %v52
  %210 = vmatprep.subr.mxu0 0.0
  %211 = vmatpush1.msra.mxu0 %v53
  %212 = vmatprep.subr.mxu0 0.0
  %213 = vmatpush1.msra.mxu0 %v54
  %214 = vmatprep.subr.mxu0 0.0
  %215 = vmatpush1.msra.mxu0 %v55
  %216 = vmatprep.subr.mxu0 0.0
  %217 = vmatpush1.msra.mxu0 %v56
  %218 = vmatprep.subr.mxu0 0.0
  %219 = vmatpush1.msra.mxu0 %v57
  %220 = vmatprep.subr.mxu0 0.0
  %221 = vmatpush1.msra.mxu0 %v58
  %222 = vmatprep.subr.mxu0 0.0
  %223 = vmatpush1.msra.mxu0 %v59
  %224 = vmatprep.subr.mxu0 0.0
  %225 = vmatpush1.msra.mxu0 %v60
  %226 = vmatprep.subr.mxu0 0.0
  %227 = vmatpush1.msra.mxu0 %v61
  %228 = vmatprep.subr.mxu0 0.0
  %229 = vmatpush1.msra.mxu0 %v62
  %230 = vmatprep.mubr.f32.mxu0 %v24
  %231 = vmatmul.mubr.f32.gmra.mrb[0].mxu0 %v23
  %v232 = vpop.f32.mrb[0].mxu0
  %v233 = vadd.f32 %v164, %v232
  %v234 = vpop.f32.mrb[0].mxu0
  %235 = vdwg.mxu0
  %236 = vmatprep.subr.mxu0 0.0
  %237 = vmatpush1.msra.mxu0 %v63
  %238 = vmatprep.subr.mxu0 0.0
  %239 = vmatpush1.msra.mxu0 %v64
  %240 = vmatprep.subr.mxu0 0.0
  %241 = vmatpush1.msra.mxu0 %v65
  %242 = vmatprep.subr.mxu0 0.0
  %243 = vmatpush1.msra.mxu0 %v66
  %244 = vmatprep.subr.mxu0 0.0
  %245 = vmatpush1.msra.mxu0 %v67
  %246 = vmatprep.subr.mxu0 0.0
  %247 = vmatpush1.msra.mxu0 %v68
  %248 = vmatprep.subr.mxu0 0.0
  %249 = vmatpush1.msra.mxu0 %v69
  %250 = vmatprep.subr.mxu0 0.0
  %251 = vmatpush1.msra.mxu0 %v70
  %252 = vmatprep.subr.mxu0 0.0
  %253 = vmatpush1.msra.mxu0 %v71
  %254 = vmatprep.subr.mxu0 0.0
  %255 = vmatpush1.msra.mxu0 %v72
  %256 = vmatprep.subr.mxu0 0.0
  %257 = vmatpush1.msra.mxu0 %v73
  %258 = vmatprep.subr.mxu0 0.0
  %259 = vmatpush1.msra.mxu0 %v74
  %260 = vmatprep.subr.mxu0 0.0
  %261 = vmatpush1.msra.mxu0 %v75
  %262 = vmatprep.subr.mxu0 0.0
  %263 = vmatpush1.msra.mxu0 %v76
  %264 = vmatprep.subr.mxu0 0.0
  %265 = vmatpush1.msra.mxu0 %v77
  %266 = vmatprep.subr.mxu0 0.0
  %267 = vmatpush1.msra.mxu0 %v78
  %268 = vmatprep.subr.mxu0 0.0
  %269 = vmatpush1.msra.mxu0 %v79
  %270 = vmatprep.subr.mxu0 0.0
  %271 = vmatpush1.msra.mxu0 %v80
  %272 = vmatprep.subr.mxu0 0.0
  %273 = vmatpush1.msra.mxu0 %v81
  %274 = vmatprep.subr.mxu0 0.0
  %275 = vmatpush1.msra.mxu0 %v82
  %276 = vmatprep.subr.mxu0 0.0
  %277 = vmatpush1.msra.mxu0 %v83
  %278 = vmatprep.subr.mxu0 0.0
  %279 = vmatpush1.msra.mxu0 %v84
  %280 = vmatprep.subr.mxu0 0.0
  %281 = vmatpush1.msra.mxu0 %v85
  %282 = vmatprep.subr.mxu0 0.0
  %283 = vmatpush1.msra.mxu0 %v86
  %284 = vmatprep.subr.mxu0 0.0
  %285 = vmatpush1.msra.mxu0 %v87
  %286 = vmatprep.subr.mxu0 0.0
  %287 = vmatpush1.msra.mxu0 %v88
  %288 = vmatprep.subr.mxu0 0.0
  %289 = vmatpush1.msra.mxu0 %v89
  %290 = vmatprep.subr.mxu0 0.0
  %291 = vmatpush1.msra.mxu0 %v90
  %292 = vmatprep.subr.mxu0 0.0
  %293 = vmatpush1.msra.mxu0 %v91
  %294 = vmatprep.subr.mxu0 0.0
  %295 = vmatpush1.msra.mxu0 %v92
  %296 = vmatprep.subr.mxu0 0.0
  %297 = vmatpush1.msra.mxu0 %v93
  %298 = vmatprep.subr.mxu0 0.0
  %299 = vmatpush1.msra.mxu0 %v94
  %300 = vmatprep.mubr.f32.mxu0 %v26
  %301 = vmatmul.mubr.f32.gmra.mrb[0].mxu0 %v25
  %v302 = vpop.f32.mrb[0].mxu0
  %v303 = vadd.f32 %v233, %v302
  %v304 = vpop.f32.mrb[0].mxu0
  %305 = vdwg.mxu0
  %306 = vmatprep.subr.mxu0 0.0
  %307 = vmatpush1.msra.mxu0 %v95
  %308 = vmatprep.subr.mxu0 0.0
  %309 = vmatpush1.msra.mxu0 %v96
  %310 = vmatprep.subr.mxu0 0.0
  %311 = vmatpush1.msra.mxu0 %v97
  %312 = vmatprep.subr.mxu0 0.0
  %313 = vmatpush1.msra.mxu0 %v98
  %314 = vmatprep.subr.mxu0 0.0
  %315 = vmatpush1.msra.mxu0 %v99
  %316 = vmatprep.subr.mxu0 0.0
  %317 = vmatpush1.msra.mxu0 %v100
  %318 = vmatprep.subr.mxu0 0.0
  %319 = vmatpush1.msra.mxu0 %v101
  %320 = vmatprep.subr.mxu0 0.0
  %321 = vmatpush1.msra.mxu0 %v102
  %322 = vmatprep.subr.mxu0 0.0
  %323 = vmatpush1.msra.mxu0 %v103
  %324 = vmatprep.subr.mxu0 0.0
  %325 = vmatpush1.msra.mxu0 %v104
  %326 = vmatprep.subr.mxu0 0.0
  %327 = vmatpush1.msra.mxu0 %v105
  %328 = vmatprep.subr.mxu0 0.0
  %329 = vmatpush1.msra.mxu0 %v106
  %330 = vmatprep.subr.mxu0 0.0
  %331 = vmatpush1.msra.mxu0 %v107
  %332 = vmatprep.subr.mxu0 0.0
  %333 = vmatpush1.msra.mxu0 %v108
  %334 = vmatprep.subr.mxu0 0.0
  %335 = vmatpush1.msra.mxu0 %v109
  %336 = vmatprep.subr.mxu0 0.0
  %337 = vmatpush1.msra.mxu0 %v110
  %338 = vmatprep.subr.mxu0 0.0
  %339 = vmatpush1.msra.mxu0 %v111
  %340 = vmatprep.subr.mxu0 0.0
  %341 = vmatpush1.msra.mxu0 %v112
  %342 = vmatprep.subr.mxu0 0.0
  %343 = vmatpush1.msra.mxu0 %v113
  %344 = vmatprep.subr.mxu0 0.0
  %345 = vmatpush1.msra.mxu0 %v114
  %346 = vmatprep.subr.mxu0 0.0
  %347 = vmatpush1.msra.mxu0 %v115
  %348 = vmatprep.subr.mxu0 0.0
  %349 = vmatpush1.msra.mxu0 %v116
  %350 = vmatprep.subr.mxu0 0.0
  %351 = vmatpush1.msra.mxu0 %v117
  %352 = vmatprep.subr.mxu0 0.0
  %353 = vmatpush1.msra.mxu0 %v118
  %354 = vmatprep.subr.mxu0 0.0
  %355 = vmatpush1.msra.mxu0 %v119
  %356 = vmatprep.subr.mxu0 0.0
  %357 = vmatpush1.msra.mxu0 %v120
  %358 = vmatprep.subr.mxu0 0.0
  %359 = vmatpush1.msra.mxu0 %v121
  %360 = vmatprep.subr.mxu0 0.0
  %361 = vmatpush1.msra.mxu0 %v122
  %362 = vmatprep.subr.mxu0 0.0
  %363 = vmatpush1.msra.mxu0 %v123
  %364 = vmatprep.subr.mxu0 0.0
  %365 = vmatpush1.msra.mxu0 %v124
  %366 = vmatprep.subr.mxu0 0.0
  %367 = vmatpush1.msra.mxu0 %v125
  %368 = vmatprep.subr.mxu0 0.0
  %369 = vmatpush1.msra.mxu0 %v126
  %370 = vmatprep.mubr.f32.mxu0 %v28
  %371 = vmatmul.mubr.f32.gmra.mrb[0].mxu0 %v27
  %v372 = vpop.f32.mrb[0].mxu0
  %v373 = vadd.f32 %v303, %v372
  %v374 = vpop.f32.mrb[0].mxu0
  %375 = vdwg.mxu0
  %376 = vmatprep.subr.mxu0 0.0
  %377 = vmatpush1.msra.mxu0 %v127
  %378 = vmatprep.subr.mxu0 0.0
  %379 = vmatpush1.msra.mxu0 %v128
  %380 = vmatprep.subr.mxu0 0.0
  %381 = vmatpush1.msra.mxu0 %v129
  %382 = vmatprep.subr.mxu0 0.0
  %383 = vmatpush1.msra.mxu0 %v130
  %384 = vmatprep.subr.mxu0 0.0
  %385 = vmatpush1.msra.mxu0 %v131
  %386 = vmatprep.subr.mxu0 0.0
  %387 = vmatpush1.msra.mxu0 %v132
  %388 = vmatprep.subr.mxu0 0.0
  %389 = vmatpush1.msra.mxu0 %v133
  %390 = vmatprep.subr.mxu0 0.0
  %391 = vmatpush1.msra.mxu0 %v134
  %392 = vmatprep.subr.mxu0 0.0
  %393 = vmatpush1.msra.mxu0 %v135
  %394 = vmatprep.subr.mxu0 0.0
  %395 = vmatpush1.msra.mxu0 %v136
  %396 = vmatprep.subr.mxu0 0.0
  %397 = vmatpush1.msra.mxu0 %v137
  %398 = vmatprep.subr.mxu0 0.0
  %399 = vmatpush1.msra.mxu0 %v138
  %400 = vmatprep.subr.mxu0 0.0
  %401 = vmatpush1.msra.mxu0 %v139
  %402 = vmatprep.subr.mxu0 0.0
  %403 = vmatpush1.msra.mxu0 %v140
  %404 = vmatprep.subr.mxu0 0.0
  %405 = vmatpush1.msra.mxu0 %v141
  %406 = vmatprep.subr.mxu0 0.0
  %407 = vmatpush1.msra.mxu0 %v142
  %408 = vmatprep.subr.mxu0 0.0
  %409 = vmatpush1.msra.mxu0 %v143
  %410 = vmatprep.subr.mxu0 0.0
  %411 = vmatpush1.msra.mxu0 %v144
  %412 = vmatprep.subr.mxu0 0.0
  %413 = vmatpush1.msra.mxu0 %v145
  %414 = vmatprep.subr.mxu0 0.0
  %415 = vmatpush1.msra.mxu0 %v146
  %416 = vmatprep.subr.mxu0 0.0
  %417 = vmatpush1.msra.mxu0 %v147
  %418 = vmatprep.subr.mxu0 0.0
  %419 = vmatpush1.msra.mxu0 %v148
  %420 = vmatprep.subr.mxu0 0.0
  %421 = vmatpush1.msra.mxu0 %v149
  %422 = vmatprep.subr.mxu0 0.0
  %423 = vmatpush1.msra.mxu0 %v150
  %424 = vmatprep.subr.mxu0 0.0
  %425 = vmatpush1.msra.mxu0 %v151
  %426 = vmatprep.subr.mxu0 0.0
  %427 = vmatpush1.msra.mxu0 %v152
  %428 = vmatprep.subr.mxu0 0.0
  %429 = vmatpush1.msra.mxu0 %v153
  %430 = vmatprep.subr.mxu0 0.0
  %431 = vmatpush1.msra.mxu0 %v154
  %432 = vmatprep.subr.mxu0 0.0
  %433 = vmatpush1.msra.mxu0 %v155
  %434 = vmatprep.subr.mxu0 0.0
  %435 = vmatpush1.msra.mxu0 %v156
  %436 = vmatprep.subr.mxu0 0.0
  %437 = vmatpush1.msra.mxu0 %v157
  %438 = vmatprep.subr.mxu0 0.0
  %439 = vmatpush1.msra.mxu0 %v158
  %440 = vmatprep.mubr.f32.mxu0 %v30
  %441 = vmatmul.mubr.f32.gmra.mrb[0].mxu0 %v29
  %v442 = vpop.f32.mrb[0].mxu0
  %v443 = vadd.f32 %v373, %v442
  %v444 = vpop.f32.mrb[0].mxu0
  %445 = vdwg.mxu0
  %v446 = vmax.f32 %v443, 0.0
  %v447 = vld [vmem:[%s3] sm:$0xff]
  %v448 = vld [vmem:[%s3 + $0x8] sm:$0xff]
  %v449 = vld [vmem:[%s3 + $0x10] sm:$0xff]
  %v450 = vld [vmem:[%s3 + $0x18] sm:$0xff]
  %v451 = vld [vmem:[%s3 + $0x20] sm:$0xff]
  %v452 = vld [vmem:[%s3 + $0x28] sm:$0xff]
  %v453 = vld [vmem:[%s3 + $0x30] sm:$0xff]
  %v454 = vld [vmem:[%s3 + $0x38] sm:$0xff]
  %v455 = vld [vmem:[%s4] sm:$0x1]
  %v457 = vlaneseq
  %v458 = vshrl.u32 %v457, 7
  %v459 = vsub.s32 0, %v458
  %v460 = vrot.slane %v455, %v459
  %vm462 = vcmask 523264
  %v464 = vsel %vm462, %v446, 0
  %466 = vmatprep.subr.mxu0 0.0
  %467 = vmatpush1.msra.mxu0 %v447
  %468 = vmatprep.subr.mxu0 0.0
  %469 = vmatpush1.msra.mxu0 %v448
  %470 = vmatprep.subr.mxu0 0.0
  %471 = vmatpush1.msra.mxu0 %v449
  %472 = vmatprep.subr.mxu0 0.0
  %473 = vmatpush1.msra.mxu0 %v450
  %474 = vmatprep.subr.mxu0 0.0
  %475 = vmatpush1.msra.mxu0 %v451
  %476 = vmatprep.subr.mxu0 0.0
  %477 = vmatpush1.msra.mxu0 %v452
  %478 = vmatprep.subr.mxu0 0.0
  %479 = vmatpush1.msra.mxu0 %v453
  %480 = vmatprep.subr.mxu0 0.0
  %481 = vmatpush1.msra.mxu0 %v454
  %482 = vmatprep.subr.mxu0 0.0
  %483 = vmatpush1.msra.mxu0 0.0
  %484 = vmatprep.subr.mxu0 0.0
  %485 = vmatpush1.msra.mxu0 0.0
  %486 = vmatprep.subr.mxu0 0.0
  %487 = vmatpush1.msra.mxu0 0.0
  %488 = vmatprep.subr.mxu0 0.0
  %489 = vmatpush1.msra.mxu0 0.0
  %490 = vmatprep.subr.mxu0 0.0
  %491 = vmatpush1.msra.mxu0 0.0
  %492 = vmatprep.subr.mxu0 0.0
  %493 = vmatpush1.msra.mxu0 0.0
  %494 = vmatprep.subr.mxu0 0.0
  %495 = vmatpush1.msra.mxu0 0.0
  %496 = vmatprep.subr.mxu0 0.0
  %497 = vmatpush1.msra.mxu0 0.0
  %498 = vmatprep.subr.mxu0 0.0
  %499 = vmatpush1.msra.mxu0 0.0
  %500 = vmatprep.subr.mxu0 0.0
  %501 = vmatpush1.msra.mxu0 0.0
  %502 = vmatprep.subr.mxu0 0.0
  %503 = vmatpush1.msra.mxu0 0.0
  %504 = vmatprep.subr.mxu0 0.0
  %505 = vmatpush1.msra.mxu0 0.0
  %506 = vmatprep.subr.mxu0 0.0
  %507 = vmatpush1.msra.mxu0 0.0
  %508 = vmatprep.subr.mxu0 0.0
  %509 = vmatpush1.msra.mxu0 0.0
  %510 = vmatprep.subr.mxu0 0.0
  %511 = vmatpush1.msra.mxu0 0.0
  %512 = vmatprep.subr.mxu0 0.0
  %513 = vmatpush1.msra.mxu0 0.0
  %514 = vmatprep.subr.mxu0 0.0
  %515 = vmatpush1.msra.mxu0 0.0
  %516 = vmatprep.subr.mxu0 0.0
  %517 = vmatpush1.msra.mxu0 0.0
  %518 = vmatprep.subr.mxu0 0.0
  %519 = vmatpush1.msra.mxu0 0.0
  %520 = vmatprep.subr.mxu0 0.0
  %521 = vmatpush1.msra.mxu0 0.0
  %522 = vmatprep.subr.mxu0 0.0
  %523 = vmatpush1.msra.mxu0 0.0
  %524 = vmatprep.subr.mxu0 0.0
  %525 = vmatpush1.msra.mxu0 0.0
  %526 = vmatprep.subr.mxu0 0.0
  %527 = vmatpush1.msra.mxu0 0.0
  %528 = vmatprep.subr.mxu0 0.0
  %529 = vmatpush1.msra.mxu0 0.0
  %530 = vmatprep.mubr.f32.mxu0 0.0
  %531 = vmatmul.mubr.f32.gmra.mrb[0].mxu0 %v464
  %v532 = vpop.f32.mrb[0].mxu0
  %v533 = vadd.f32 %v460, %v532
  %v534 = vpop.f32.mrb[0].mxu0
  %535 = vdwg.mxu0
  %v536 = vlaneseq
  %v537 = vand.u32 %v536, 127
  %vm538 = vcmp.ge.s32.totalorder %v537, 0
  %vm539 = vcmp.lt.s32.totalorder %v537, 2
  %vm540 = vmand %vm538, %vm539
  %v541 = vsel %vm540, 1, 0
  %vm542 = vcmp.eq.s32.totalorder %v541, 1
  %v543 = vsel %vm542, %v533, -inf
  %v544 = vsel %vm462, %v543, -inf
  %545 = vmax.xlane.f32.xlu0 %v544
  %v546 = vpop.xlane.xlu0 %545
  %v547 = vsel %vm542, %v546, 0.0
  %v548 = vadd.f32 %v547, 0.0
  %vm549 = vcmp.ge.s32.totalorder %v537, 2
  %vm550 = vcmp.lt.s32.totalorder %v537, 6
  %vm551 = vmand %vm549, %vm550
  %v552 = vsel %vm551, 1, 0
  %vm553 = vcmp.eq.s32.totalorder %v552, 1
  %v554 = vsel %vm553, %v533, -inf
  %v555 = vsel %vm462, %v554, -inf
  %556 = vmax.xlane.f32.xlu0 %v555
  %v557 = vpop.xlane.xlu0 %556
  %v558 = vsel %vm553, %v557, 0.0
  %v559 = vadd.f32 %v548, %v558
  %vm560 = vcmp.ge.s32.totalorder %v537, 6
  %vm561 = vcmp.lt.s32.totalorder %v537, 14
  %vm562 = vmand %vm560, %vm561
  %v563 = vsel %vm562, 1, 0
  %vm564 = vcmp.eq.s32.totalorder %v563, 1
  %v565 = vsel %vm564, %v533, -inf
  %v566 = vsel %vm462, %v565, -inf
  %567 = vmax.xlane.f32.xlu0 %v566
  %v568 = vpop.xlane.xlu0 %567
  %v569 = vsel %vm564, %v568, 0.0
  %v570 = vadd.f32 %v559, %v569
  %vm571 = vcmp.ge.s32.totalorder %v537, 14
  %vm572 = vcmp.lt.s32.totalorder %v537, 30
  %vm573 = vmand %vm571, %vm572
  %v574 = vsel %vm573, 1, 0
  %vm575 = vcmp.eq.s32.totalorder %v574, 1
  %v576 = vsel %vm575, %v533, -inf
  %v577 = vsel %vm462, %v576, -inf
  %578 = vmax.xlane.f32.xlu0 %v577
  %v579 = vpop.xlane.xlu0 %578
  %v580 = vsel %vm575, %v579, 0.0
  %v581 = vadd.f32 %v570, %v580
  %vm582 = vcmp.ge.s32.totalorder %v537, 30
  %vm583 = vcmp.lt.s32.totalorder %v537, 62
  %vm584 = vmand %vm582, %vm583
  %v585 = vsel %vm584, 1, 0
  %vm586 = vcmp.eq.s32.totalorder %v585, 1
  %v587 = vsel %vm586, %v533, -inf
  %v588 = vsel %vm462, %v587, -inf
  %589 = vmax.xlane.f32.xlu0 %v588
  %v590 = vpop.xlane.xlu0 %589
  %v591 = vsel %vm586, %v590, 0.0
  %v592 = vadd.f32 %v581, %v591
  %v593 = vsub.f32 %v533, %v592
  %v594 = vmul.f32 %v593, 1.442695
  %v595 = vpow.pop %v594
  %v596 = vld [vmem:[%s5] sm:$0xff]
  %v597 = vld [vmem:[%s5 + $0x8] sm:$0xff]
  %v598 = vld [vmem:[%s5 + $0x10] sm:$0xff]
  %v599 = vld [vmem:[%s5 + $0x18] sm:$0xff]
  %v600 = vld [vmem:[%s5 + $0x20] sm:$0xff]
  %v601 = vld [vmem:[%s5 + $0x28] sm:$0xff]
  %v602 = vld [vmem:[%s5 + $0x30] sm:$0xff]
  %v603 = vld [vmem:[%s5 + $0x38] sm:$0xff]
  %v605 = vsel %vm462, %v595, 0
  %607 = vmatprep.subr.mxu0 0.0
  %608 = vmatpush1.msra.mxu0 %v596
  %609 = vmatprep.subr.mxu0 0.0
  %610 = vmatpush1.msra.mxu0 %v597
  %611 = vmatprep.subr.mxu0 0.0
  %612 = vmatpush1.msra.mxu0 %v598
  %613 = vmatprep.subr.mxu0 0.0
  %614 = vmatpush1.msra.mxu0 %v599
  %615 = vmatprep.subr.mxu0 0.0
  %616 = vmatpush1.msra.mxu0 %v600
  %617 = vmatprep.subr.mxu0 0.0
  %618 = vmatpush1.msra.mxu0 %v601
  %619 = vmatprep.subr.mxu0 0.0
  %620 = vmatpush1.msra.mxu0 %v602
  %621 = vmatprep.subr.mxu0 0.0
  %622 = vmatpush1.msra.mxu0 %v603
  %623 = vmatprep.subr.mxu0 0.0
  %624 = vmatpush1.msra.mxu0 0.0
  %625 = vmatprep.subr.mxu0 0.0
  %626 = vmatpush1.msra.mxu0 0.0
  %627 = vmatprep.subr.mxu0 0.0
  %628 = vmatpush1.msra.mxu0 0.0
  %629 = vmatprep.subr.mxu0 0.0
  %630 = vmatpush1.msra.mxu0 0.0
  %631 = vmatprep.subr.mxu0 0.0
  %632 = vmatpush1.msra.mxu0 0.0
  %633 = vmatprep.subr.mxu0 0.0
  %634 = vmatpush1.msra.mxu0 0.0
  %635 = vmatprep.subr.mxu0 0.0
  %636 = vmatpush1.msra.mxu0 0.0
  %637 = vmatprep.subr.mxu0 0.0
  %638 = vmatpush1.msra.mxu0 0.0
  %639 = vmatprep.subr.mxu0 0.0
  %640 = vmatpush1.msra.mxu0 0.0
  %641 = vmatprep.subr.mxu0 0.0
  %642 = vmatpush1.msra.mxu0 0.0
  %643 = vmatprep.subr.mxu0 0.0
  %644 = vmatpush1.msra.mxu0 0.0
  %645 = vmatprep.subr.mxu0 0.0
  %646 = vmatpush1.msra.mxu0 0.0
  %647 = vmatprep.subr.mxu0 0.0
  %648 = vmatpush1.msra.mxu0 0.0
  %649 = vmatprep.subr.mxu0 0.0
  %650 = vmatpush1.msra.mxu0 0.0
  %651 = vmatprep.subr.mxu0 0.0
  %652 = vmatpush1.msra.mxu0 0.0
  %653 = vmatprep.subr.mxu0 0.0
  %654 = vmatpush1.msra.mxu0 0.0
  %655 = vmatprep.subr.mxu0 0.0
  %656 = vmatpush1.msra.mxu0 0.0
  %657 = vmatprep.subr.mxu0 0.0
  %658 = vmatpush1.msra.mxu0 0.0
  %659 = vmatprep.subr.mxu0 0.0
  %660 = vmatpush1.msra.mxu0 0.0
  %661 = vmatprep.subr.mxu0 0.0
  %662 = vmatpush1.msra.mxu0 0.0
  %663 = vmatprep.subr.mxu0 0.0
  %664 = vmatpush1.msra.mxu0 0.0
  %665 = vmatprep.subr.mxu0 0.0
  %666 = vmatpush1.msra.mxu0 0.0
  %667 = vmatprep.subr.mxu0 0.0
  %668 = vmatpush1.msra.mxu0 0.0
  %669 = vmatprep.subr.mxu0 0.0
  %670 = vmatpush1.msra.mxu0 0.0
  %671 = vmatprep.mubr.f32.mxu0 0.0
  %672 = vmatmul.mubr.f32.gmra.mrb[0].mxu0 %v605
  %v673 = vpop.f32.mrb[0].mxu0
  %v674 = vadd.f32 0.0, %v673
  %v675 = vpop.f32.mrb[0].mxu0
  %676 = vdwg.mxu0
  %v677 = vrcp.pop %v674
  %v678 = vmul.f32 %v595, %v677
  %680 = vrot.lane.b32.xlu0 %v678, 64
  %v681 = vpop.permute.xlu0 %680
  %v683 = vsel %vm462, %v533, %v681
  %684 = vst [vmem:[%s6] sm:$0xff] %v683
  // Predicated region
  $region26: #{forward.1} parent=0 // pred_check
    _
  $region27: #{forward.1} parent=0 // pred_check_branch
    %686 = sbr.rel (0) target = $region29
  $region28: #{forward.1} parent=0 // pred_region
    _
  $region29: #{forward.1} parent=0 // pred_fallthru
    _
  // Predicated region
  $region30: #{forward.1} parent=0 // pred_check
    _
  $region31: #{forward.1} parent=0 // pred_check_branch
    %688 = sbr.rel (0) target = $region33
  $region32: #{forward.1} parent=0 // pred_region
    _
  $region33: #{forward.1} parent=0 // pred_fallthru
    _

</llo_original>
